<compile_context>
chip_gen: v7x
topology: tpu7x:2x2x1
jax: 0.10.0
libtpu: 0.0.40
codegen_flags: <defaults>
</compile_context>

<pallas_src>
import functools

import jax
import jax.numpy as jnp
from jax.experimental import pallas as pl
from jax.experimental.pallas import tpu as pltpu


def pack_cca_params(wq, bq, wk, bk, wv, bv):
    """Pack the three 1x1-conv projections into one fused weight/bias (done once).

    Row layout: [0:Cq]=Q, [Cq_pad:Cq_pad+Cq]=K, [2*Cq_pad:2*Cq_pad+3C]=V,
    row 2*Cq_pad+3C = ones-row (zero weights, bias 1.0 -> softmax denominator),
    remaining rows zero.  Padded Q/K rows contribute exactly zero to Q.K^T.
    """
    f32 = jnp.float32
    Cq, Ct = wq.shape[0], wq.shape[1]
    Cq_pad = max(8, -(-Cq // 8) * 8)
    v_rows = -(-(Ct + 1) // 8) * 8
    rows = 2 * Cq_pad + v_rows

    w = jnp.zeros((rows, Ct), f32)
    w = w.at[:Cq].set(wq[:, :, 0, 0].astype(f32))
    w = w.at[Cq_pad:Cq_pad + Cq].set(wk[:, :, 0, 0].astype(f32))
    w = w.at[2 * Cq_pad:2 * Cq_pad + Ct].set(wv[:, :, 0, 0].astype(f32))

    bias = jnp.zeros((rows, 1), f32)
    bias = bias.at[:Cq, 0].set(bq.astype(f32))
    bias = bias.at[Cq_pad:Cq_pad + Cq, 0].set(bk.astype(f32))
    bias = bias.at[2 * Cq_pad:2 * Cq_pad + Ct, 0].set(bv.astype(f32))
    bias = bias.at[2 * Cq_pad + Ct, 0].set(1.0)        # ones-row -> denominator
    return w, bias, Cq_pad


def _cca_kernel(r_ref, g_ref, b_ref, w_ref, bias_ref,
                ro_ref, go_ref, bo_ref, *, C, Cq_pad):
    # r/g/b refs : (1, C, HW)  channel-major, lanes = HW (lane-dense)
    # w_ref      : (rows, 3C)  fused QKV weight; bias_ref : (rows, 1)
    r_c = r_ref[0]
    g_c = g_ref[0]
    b_c = b_ref[0]
    x_c = jnp.concatenate([r_c, g_c, b_c], axis=0)                  # (3C, HW)

    # single fused projection matmul: rows = [Q | K | V | ones | pad]
    qkv = jnp.dot(w_ref[...], x_c,
                  preferred_element_type=jnp.float32) + bias_ref[...]
    q_t = qkv[0:Cq_pad]                                             # (Cq_pad, HW)
    k_t = qkv[Cq_pad:2 * Cq_pad]                                    # (Cq_pad, HW)
    v_1 = qkv[2 * Cq_pad:]                                          # (Vp, HW): V rows + ones row

    # S^T[j, i] = sum_c K[j, c] * Q[i, c]; softmax runs along sublanes (axis 0).
    s_t = jnp.dot(k_t.T, q_t, preferred_element_type=jnp.float32)   # (HW, HW)
    m = jnp.max(s_t, axis=0, keepdims=True)                         # (1, HW)
    p = jnp.exp(s_t - m)                                            # unnormalized probs

    # out'[c, i] = sum_j V'[c, j] * p[j, i];  row 3C of V' is ones -> denominator.
    o_1 = jnp.dot(v_1, p, preferred_element_type=jnp.float32)       # (Vp, HW)
    inv = 1.0 / o_1[3 * C:3 * C + 1]                                # (1, HW)

    ro_ref[0] = (r_c + o_1[0 * C:1 * C] * inv).astype(ro_ref.dtype)
    go_ref[0] = (g_c + o_1[1 * C:2 * C] * inv).astype(go_ref.dtype)
    bo_ref[0] = (b_c + o_1[2 * C:3 * C] * inv).astype(bo_ref.dtype)


@functools.partial(jax.jit, static_argnames=("cq_pad",))
def cross_channel_attention(r, g, b, w_all, b_all, *, cq_pad):
    """r, g, b: (B, C, H, W); w_all/b_all from pack_cca_params (packed once)."""
    B, C, H, W = r.shape
    Ct = 3 * C
    HW = H * W
    rows = w_all.shape[0]

    # free reshapes: NCHW is already channel-major, HW=256 lands on lanes
    r2 = r.reshape(B, C, HW)
    g2 = g.reshape(B, C, HW)
    b2 = b.reshape(B, C, HW)

    def batch_spec():
        return pl.BlockSpec((1, C, HW), lambda i: (i, 0, 0))

    def const_spec(shape):
        return pl.BlockSpec(shape, lambda i: (0, 0))

    flops = 2 * B * (rows * Ct * HW + HW * cq_pad * HW
                     + (rows - 2 * cq_pad) * HW * HW)
    cost = pl.CostEstimate(
        flops=flops, transcendentals=B * HW * HW,
        bytes_accessed=4 * (6 * B * C * HW + rows * (Ct + 1)))

    out_sds = jax.ShapeDtypeStruct((B, C, HW), r.dtype)
    r_o, g_o, b_o = pl.pallas_call(
        functools.partial(_cca_kernel, C=C, Cq_pad=cq_pad),
        out_shape=(out_sds, out_sds, out_sds),
        grid_spec=pltpu.PrefetchScalarGridSpec(
            num_scalar_prefetch=0,
            grid=(B,),
            in_specs=[
                batch_spec(), batch_spec(), batch_spec(),
                const_spec((rows, Ct)), const_spec((rows, 1)),
            ],
            out_specs=(batch_spec(), batch_spec(), batch_spec()),
        ),
        compiler_params=pltpu.CompilerParams(
            dimension_semantics=("parallel",)),
        cost_estimate=cost,
    )(r2, g2, b2, w_all, b_all)

    return (r_o.reshape(B, C, H, W),
            g_o.reshape(B, C, H, W),
            b_o.reshape(B, C, H, W))


def _ref_forward(r, g, b, wq, bq, wk, bk, wv, bv):
    B, C, H, W = r.shape
    rgb = jnp.concatenate([r, g, b], axis=1)                            # (B, 3C, H, W)

    def conv1x1(xx, w, bias):
        return (jnp.einsum('bchw,oc->bohw', xx, w[:, :, 0, 0])
                + bias[None, :, None, None])

    q = conv1x1(rgb, wq, bq).reshape(B, -1, H * W).transpose(0, 2, 1)   # (B, HW, Cq)
    k = conv1x1(rgb, wk, bk).reshape(B, -1, H * W)                      # (B, Cq, HW)
    v = conv1x1(rgb, wv, bv).reshape(B, -1, H * W)                      # (B, 3C, HW)
    attn = jax.nn.softmax(jnp.einsum('bic,bcj->bij', q, k), axis=-1)    # (B, HW, HW)
    out = jnp.einsum('bcj,bij->bci', v, attn).reshape(B, 3 * C, H, W)
    r_o, g_o, b_o = jnp.split(out, 3, axis=1)
    return r + r_o, g + g_o, b + b_o


if __name__ == "__main__":
    B, C, H, W = 2, 4, 16, 16          # per-colour channels C; n_feats = 3C
    n_feats, reduction = 3 * C, 4
    Cq = n_feats // reduction          # 3

    key = jax.random.PRNGKey(0)
    kr, kg, kb, k1, k2, k3, k4, k5, k6 = jax.random.split(key, 9)

    r = jax.random.normal(kr, (B, C, H, W), jnp.float32)
    g = jax.random.normal(kg, (B, C, H, W), jnp.float32)
    b = jax.random.normal(kb, (B, C, H, W), jnp.float32)

    bound = 1.0 / (n_feats ** 0.5)     # PyTorch-style uniform init bounds (1x1 conv)
    wq = jax.random.uniform(k1, (Cq, n_feats, 1, 1), jnp.float32, -bound, bound)
    bq = jax.random.uniform(k2, (Cq,), jnp.float32, -bound, bound)
    wk = jax.random.uniform(k3, (Cq, n_feats, 1, 1), jnp.float32, -bound, bound)
    bk = jax.random.uniform(k4, (Cq,), jnp.float32, -bound, bound)
    wv = jax.random.uniform(k5, (n_feats, n_feats, 1, 1), jnp.float32, -bound, bound)
    bv = jax.random.uniform(k6, (n_feats,), jnp.float32, -bound, bound)

    # weight packing hoisted out of the per-call path (done exactly once).
    w_all, b_all, cq_pad = pack_cca_params(wq, bq, wk, bk, wv, bv)

    out = jax.block_until_ready(
        cross_channel_attention(r, g, b, w_all, b_all, cq_pad=cq_pad))
    ref = jax.block_until_ready(_ref_forward(r, g, b, wq, bq, wk, bk, wv, bv))

    for o, rf in zip(out, ref):
        assert o.shape == rf.shape
        assert jnp.allclose(o, rf, atol=1e-4, rtol=1e-4), \
            f"max abs err {jnp.max(jnp.abs(o - rf))}"

    print("KERNEL_OK")
</pallas_src>

<mosaic_0001>
module attributes {stable_mosaic.version = 11 : i64} {
  func.func @_cca_kernel(%arg0: i32, %arg1: memref<1x4x256xf32, #tpu.memory_space<vmem>>, %arg2: memref<1x4x256xf32, #tpu.memory_space<vmem>>, %arg3: memref<1x4x256xf32, #tpu.memory_space<vmem>>, %arg4: memref<32x12xf32, #tpu.memory_space<vmem>>, %arg5: memref<32x1xf32, #tpu.memory_space<vmem>>, %arg6: memref<1x4x256xf32, #tpu.memory_space<vmem>>, %arg7: memref<1x4x256xf32, #tpu.memory_space<vmem>>, %arg8: memref<1x4x256xf32, #tpu.memory_space<vmem>>) attributes {dimension_semantics = [#tpu.dimension_semantics<parallel>], iteration_bounds = array<i64: 2>, scalar_prefetch = 0 : i64, scratch_operands = 0 : i64, tpu.core_type = #tpu.core_type<tc>, window_params = [{transform_indices = @transform_0, window_bounds = array<i64: 1, 4, 256>}, {transform_indices = @transform_1, window_bounds = array<i64: 1, 4, 256>}, {transform_indices = @transform_2, window_bounds = array<i64: 1, 4, 256>}, {pipeline_mode = #tpu.pipeline_mode<synchronous>, transform_indices = @transform_3, window_bounds = array<i64: 32, 12>}, {pipeline_mode = #tpu.pipeline_mode<synchronous>, transform_indices = @transform_4, window_bounds = array<i64: 32, 1>}, {transform_indices = @transform_5, window_bounds = array<i64: 1, 4, 256>}, {transform_indices = @transform_6, window_bounds = array<i64: 1, 4, 256>}, {transform_indices = @transform_7, window_bounds = array<i64: 1, 4, 256>}]} {
    %c0 = arith.constant 0 : index
    %c0_0 = arith.constant 0 : index
    %c0_1 = arith.constant 0 : index
    %0 = vector.load %arg1[%c0, %c0_0, %c0_1] : memref<1x4x256xf32, #tpu.memory_space<vmem>>, vector<1x4x256xf32>
    %1 = vector.shape_cast %0 : vector<1x4x256xf32> to vector<4x256xf32>
    %c0_2 = arith.constant 0 : index
    %c0_3 = arith.constant 0 : index
    %c0_4 = arith.constant 0 : index
    %2 = vector.load %arg2[%c0_2, %c0_3, %c0_4] : memref<1x4x256xf32, #tpu.memory_space<vmem>>, vector<1x4x256xf32>
    %3 = vector.shape_cast %2 : vector<1x4x256xf32> to vector<4x256xf32>
    %c0_5 = arith.constant 0 : index
    %c0_6 = arith.constant 0 : index
    %c0_7 = arith.constant 0 : index
    %4 = vector.load %arg3[%c0_5, %c0_6, %c0_7] : memref<1x4x256xf32, #tpu.memory_space<vmem>>, vector<1x4x256xf32>
    %5 = vector.shape_cast %4 : vector<1x4x256xf32> to vector<4x256xf32>
    %6 = tpu.concatenate %1, %3, %5 in 0 : vector<4x256xf32>, vector<4x256xf32>, vector<4x256xf32> -> vector<12x256xf32>
    %c0_8 = arith.constant 0 : index
    %c0_9 = arith.constant 0 : index
    %7 = vector.load %arg4[%c0_8, %c0_9] : memref<32x12xf32, #tpu.memory_space<vmem>>, vector<32x12xf32>
    %cst = arith.constant dense<0.000000e+00> : vector<32x256xf32>
    %8 = tpu.matmul %7, %6, %cst {dimension_numbers = #tpu.dot_dimension_numbers<[1], [0], [0], [1], [0, 0, 1, 1], [], []>} : vector<32x12xf32>, vector<12x256xf32>, vector<32x256xf32> -> vector<32x256xf32>
    %c0_10 = arith.constant 0 : index
    %c0_11 = arith.constant 0 : index
    %9 = vector.load %arg5[%c0_10, %c0_11] : memref<32x1xf32, #tpu.memory_space<vmem>>, vector<32x1xf32>
    %10 = vector.broadcast %9 : vector<32x1xf32> to vector<32x256xf32>
    %11 = arith.addf %8, %10 : vector<32x256xf32>
    %12 = vector.extract_strided_slice %11 {offsets = [0, 0], sizes = [8, 256], strides = [1, 1]} : vector<32x256xf32> to vector<8x256xf32>
    %13 = vector.extract_strided_slice %11 {offsets = [8, 0], sizes = [8, 256], strides = [1, 1]} : vector<32x256xf32> to vector<8x256xf32>
    %14 = vector.extract_strided_slice %11 {offsets = [16, 0], sizes = [16, 256], strides = [1, 1]} : vector<32x256xf32> to vector<16x256xf32>
    %15 = tpu.transpose %13, [1, 0] : vector<8x256xf32> -> vector<256x8xf32>
    %cst_12 = arith.constant dense<0.000000e+00> : vector<256x256xf32>
    %16 = tpu.matmul %15, %12, %cst_12 {dimension_numbers = #tpu.dot_dimension_numbers<[1], [0], [0], [1], [0, 0, 1, 1], [], []>} : vector<256x8xf32>, vector<8x256xf32>, vector<256x256xf32> -> vector<256x256xf32>
    %cst_13 = arith.constant dense<0xFF800000> : vector<256xf32>
    %17 = vector.multi_reduction <maximumf>, %16, %cst_13 [0] : vector<256x256xf32> to vector<256xf32>
    %18 = vector.shape_cast %17 : vector<256xf32> to vector<1x256xf32>
    %19 = vector.broadcast %18 : vector<1x256xf32> to vector<256x256xf32>
    %20 = arith.subf %16, %19 : vector<256x256xf32>
    %21 = math.exp %20 : vector<256x256xf32>
    %cst_14 = arith.constant dense<0.000000e+00> : vector<16x256xf32>
    %22 = tpu.matmul %14, %21, %cst_14 {dimension_numbers = #tpu.dot_dimension_numbers<[1], [0], [0], [1], [0, 0, 1, 1], [], []>} : vector<16x256xf32>, vector<256x256xf32>, vector<16x256xf32> -> vector<16x256xf32>
    %23 = vector.extract_strided_slice %22 {offsets = [12, 0], sizes = [1, 256], strides = [1, 1]} : vector<16x256xf32> to vector<1x256xf32>
    %cst_15 = arith.constant 1.000000e+00 : f32
    %24 = vector.broadcast %cst_15 : f32 to vector<1x256xf32>
    %25 = arith.divf %24, %23 : vector<1x256xf32>
    %26 = vector.extract_strided_slice %22 {offsets = [0, 0], sizes = [4, 256], strides = [1, 1]} : vector<16x256xf32> to vector<4x256xf32>
    %27 = vector.broadcast %25 : vector<1x256xf32> to vector<4x256xf32>
    %28 = arith.mulf %26, %27 : vector<4x256xf32>
    %29 = arith.addf %1, %28 : vector<4x256xf32>
    %c0_16 = arith.constant 0 : index
    %c0_17 = arith.constant 0 : index
    %c0_18 = arith.constant 0 : index
    %30 = vector.load %arg6[%c0_16, %c0_17, %c0_18] : memref<1x4x256xf32, #tpu.memory_space<vmem>>, vector<1x4x256xf32>
    %31 = vector.shape_cast %30 : vector<1x4x256xf32> to vector<4x256xf32>
    %32 = vector.shape_cast %29 : vector<4x256xf32> to vector<1x4x256xf32>
    tpu.vector_store %arg6[%c0_16, %c0_17, %c0_18], %32 {strides = array<i32>} : memref<1x4x256xf32, #tpu.memory_space<vmem>>, vector<1x4x256xf32>,
    %33 = vector.extract_strided_slice %22 {offsets = [4, 0], sizes = [4, 256], strides = [1, 1]} : vector<16x256xf32> to vector<4x256xf32>
    %34 = vector.broadcast %25 : vector<1x256xf32> to vector<4x256xf32>
    %35 = arith.mulf %33, %34 : vector<4x256xf32>
    %36 = arith.addf %3, %35 : vector<4x256xf32>
    %c0_19 = arith.constant 0 : index
    %c0_20 = arith.constant 0 : index
    %c0_21 = arith.constant 0 : index
    %37 = vector.load %arg7[%c0_19, %c0_20, %c0_21] : memref<1x4x256xf32, #tpu.memory_space<vmem>>, vector<1x4x256xf32>
    %38 = vector.shape_cast %37 : vector<1x4x256xf32> to vector<4x256xf32>
    %39 = vector.shape_cast %36 : vector<4x256xf32> to vector<1x4x256xf32>
    tpu.vector_store %arg7[%c0_19, %c0_20, %c0_21], %39 {strides = array<i32>} : memref<1x4x256xf32, #tpu.memory_space<vmem>>, vector<1x4x256xf32>,
    %40 = vector.extract_strided_slice %22 {offsets = [8, 0], sizes = [4, 256], strides = [1, 1]} : vector<16x256xf32> to vector<4x256xf32>
    %41 = vector.broadcast %25 : vector<1x256xf32> to vector<4x256xf32>
    %42 = arith.mulf %40, %41 : vector<4x256xf32>
    %43 = arith.addf %5, %42 : vector<4x256xf32>
    %c0_22 = arith.constant 0 : index
    %c0_23 = arith.constant 0 : index
    %c0_24 = arith.constant 0 : index
    %44 = vector.load %arg8[%c0_22, %c0_23, %c0_24] : memref<1x4x256xf32, #tpu.memory_space<vmem>>, vector<1x4x256xf32>
    %45 = vector.shape_cast %44 : vector<1x4x256xf32> to vector<4x256xf32>
    %46 = vector.shape_cast %43 : vector<4x256xf32> to vector<1x4x256xf32>
    tpu.vector_store %arg8[%c0_22, %c0_23, %c0_24], %46 {strides = array<i32>} : memref<1x4x256xf32, #tpu.memory_space<vmem>>, vector<1x4x256xf32>,
    return
  }
  func.func @transform_0(%arg0: i32) -> (i32, i32, i32) {
    %c0_i32 = arith.constant 0 : i32
    %c0_i32_0 = arith.constant 0 : i32
    %c0_i32_1 = arith.constant 0 : i32
    return %arg0, %c0_i32, %c0_i32_0 : i32, i32, i32
  }
  func.func @transform_1(%arg0: i32) -> (i32, i32, i32) {
    %c0_i32 = arith.constant 0 : i32
    %c0_i32_0 = arith.constant 0 : i32
    %c0_i32_1 = arith.constant 0 : i32
    return %arg0, %c0_i32, %c0_i32_0 : i32, i32, i32
  }
  func.func @transform_2(%arg0: i32) -> (i32, i32, i32) {
    %c0_i32 = arith.constant 0 : i32
    %c0_i32_0 = arith.constant 0 : i32
    %c0_i32_1 = arith.constant 0 : i32
    return %arg0, %c0_i32, %c0_i32_0 : i32, i32, i32
  }
  func.func @transform_3(%arg0: i32) -> (i32, i32) {
    %c0_i32 = arith.constant 0 : i32
    %c0_i32_0 = arith.constant 0 : i32
    %c0_i32_1 = arith.constant 0 : i32
    return %c0_i32, %c0_i32_0 : i32, i32
  }
  func.func @transform_4(%arg0: i32) -> (i32, i32) {
    %c0_i32 = arith.constant 0 : i32
    %c0_i32_0 = arith.constant 0 : i32
    %c0_i32_1 = arith.constant 0 : i32
    return %c0_i32, %c0_i32_0 : i32, i32
  }
  func.func @transform_5(%arg0: i32) -> (i32, i32, i32) {
    %c0_i32 = arith.constant 0 : i32
    %c0_i32_0 = arith.constant 0 : i32
    %c0_i32_1 = arith.constant 0 : i32
    return %arg0, %c0_i32, %c0_i32_0 : i32, i32, i32
  }
  func.func @transform_6(%arg0: i32) -> (i32, i32, i32) {
    %c0_i32 = arith.constant 0 : i32
    %c0_i32_0 = arith.constant 0 : i32
    %c0_i32_1 = arith.constant 0 : i32
    return %arg0, %c0_i32, %c0_i32_0 : i32, i32, i32
  }
  func.func @transform_7(%arg0: i32) -> (i32, i32, i32) {
    %c0_i32 = arith.constant 0 : i32
    %c0_i32_0 = arith.constant 0 : i32
    %c0_i32_1 = arith.constant 0 : i32
    return %arg0, %c0_i32, %c0_i32_0 : i32, i32, i32
  }
}

</mosaic_0001>

<llo_original>
// kernel: cross_channel_attention.1
$region0: #{cross_channel_attention.1}
  #allocation0 [shape = 'u32[]', space=smem, size = 0x4, offset = 0x4, fixed_abs, tag = 'smem constant byte address 0x4 - core index']
  #allocation1 [shape = 'u32[144,128]{1,0:T(1,128)}', space=vmem, size = 0x12000, scoped, tag = 'internal scratch']
  %s0 = inlined_call_operand.vmem [shape: f32[2,4,256], index: 0, kind: input, shape index: {}]
  %s1 = inlined_call_operand.vmem [shape: f32[2,4,256], index: 1, kind: input, shape index: {}]
  %s2 = inlined_call_operand.vmem [shape: f32[2,4,256], index: 2, kind: input, shape index: {}]
  %s3 = inlined_call_operand.vmem [shape: f32[32,12], index: 3, kind: input, shape index: {}]
  %s4 = inlined_call_operand.vmem [shape: f32[32,1], index: 4, kind: input, shape index: {}]
  %s5 = inlined_call_operand.vmem [shape: f32[2,4,256], index: 5, kind: output, shape index: {0}]
  %s6 = inlined_call_operand.vmem [shape: f32[2,4,256], index: 6, kind: output, shape index: {1}]
  %s7 = inlined_call_operand.vmem [shape: f32[2,4,256], index: 7, kind: output, shape index: {2}]
  %8 = xla_tuple %s5, %s6, %s7
  %s9 = sld [smem:[#allocation0]]
  $region69: #{cross_channel_attention.1} parent=0
    _
  %s11 = ssub.s32 1, %s9
  %s12 = scalar_select 0, %s11, %s9
  loop: start=0, step=1, limit=4
  $region2: #{cross_channel_attention.1} parent=0 // loop_pre_header
    _
  $region3: #{cross_channel_attention.1} parent=0 // loop_header
    %s14 = sphi 0, %s18
    %p15 = scmp.ge.s32.totalorder %s14, 4
    %s24 = sphi 0, %s26
    %s27 = sphi 0, %s24
    %s28 = sphi 0, %s27
    %s44 = sphi 0, %s28
    %s50 = sphi 0, %s52
    %s53 = sphi 0, %s50
    %s54 = sphi 0, %s53
    %s70 = sphi 0, %s54
    %s76 = sphi 0, %s78
    %s79 = sphi 0, %s76
    %s80 = sphi 0, %s79
    %s96 = sphi 0, %s80
    %s100 = sphi 0, %s100
    %s102 = sphi 0, %s100
    %s103 = sphi 0, %s102
    %s117 = sphi 0, %s103
    %s121 = sphi 0, %s121
    %s123 = sphi 0, %s121
    %s124 = sphi 0, %s123
    %s138 = sphi 0, %s124
    %s144 = sphi 0, %s146
    %s147 = sphi 0, %s144
    %s148 = sphi 0, %s147
    %s164 = sphi 0, %s148
    %s170 = sphi 0, %s172
    %s173 = sphi 0, %s170
    %s174 = sphi 0, %s173
    %s190 = sphi 0, %s174
    %s196 = sphi 0, %s198
    %s199 = sphi 0, %s196
    %s200 = sphi 0, %s199
    %s216 = sphi 0, %s200
  $region4: #{cross_channel_attention.1} parent=0 // loop_header_branch
    %17 = sbr.rel (%p15) target = $region8
  $region5: #{cross_channel_attention.1} parent=0 // loop_body
    %s19 = ssub.s32 %s14, 1
    %s20 = ssub.s32 %s14, 2
    %s21 = sadd.s32 %s14, 1
    %s22 = ssub.s32 %s14, %s21
    %p23 = scmp.eq.s32.totalorder %s22, 0
    %s25 = sadd.s32 %s24, 1
    %s26 = scalar_select %p23, %s24, %s25
    %p29 = pneg %p23
    %p30 = scmp.eq.s32.totalorder %s14, 1
    %p31 = por %p29, %p30
    %p32 = scmp.ne.s32.totalorder %s24, %s27
    %p33 = scmp.eq.s32.totalorder %s14, 0
    %p34 = por %p32, %p33
    %p35 = scmp.ne.s32.totalorder %s24, %s27
    %p36 = scmp.eq.s32.totalorder %s19, 1
    %p37 = por %p35, %p36
    %p38 = scmp.ne.s32.totalorder %s27, %s28
    %p39 = scmp.eq.s32.totalorder %s19, 0
    %p40 = por %p38, %p39
    %p41 = scmp.ne.s32.totalorder %s27, %s28
    %p42 = scmp.eq.s32.totalorder %s20, 1
    %p43 = por %p41, %p42
    %p45 = scmp.ne.s32.totalorder %s28, %s44
    %p46 = scmp.eq.s32.totalorder %s20, 0
    %p47 = por %p45, %p46
    %s48 = ssub.s32 %s14, %s21
    %p49 = scmp.eq.s32.totalorder %s48, 0
    %s51 = sadd.s32 %s50, 1
    %s52 = scalar_select %p49, %s50, %s51
    %p55 = pneg %p49
    %p56 = scmp.eq.s32.totalorder %s14, 1
    %p57 = por %p55, %p56
    %p58 = scmp.ne.s32.totalorder %s50, %s53
    %p59 = scmp.eq.s32.totalorder %s14, 0
    %p60 = por %p58, %p59
    %p61 = scmp.ne.s32.totalorder %s50, %s53
    %p62 = scmp.eq.s32.totalorder %s19, 1
    %p63 = por %p61, %p62
    %p64 = scmp.ne.s32.totalorder %s53, %s54
    %p65 = scmp.eq.s32.totalorder %s19, 0
    %p66 = por %p64, %p65
    %p67 = scmp.ne.s32.totalorder %s53, %s54
    %p68 = scmp.eq.s32.totalorder %s20, 1
    %p69 = por %p67, %p68
    %p71 = scmp.ne.s32.totalorder %s54, %s70
    %p72 = scmp.eq.s32.totalorder %s20, 0
    %p73 = por %p71, %p72
    %s74 = ssub.s32 %s14, %s21
    %p75 = scmp.eq.s32.totalorder %s74, 0
    %s77 = sadd.s32 %s76, 1
    %s78 = scalar_select %p75, %s76, %s77
    %p81 = pneg %p75
    %p82 = scmp.eq.s32.totalorder %s14, 1
    %p83 = por %p81, %p82
    %p84 = scmp.ne.s32.totalorder %s76, %s79
    %p85 = scmp.eq.s32.totalorder %s14, 0
    %p86 = por %p84, %p85
    %p87 = scmp.ne.s32.totalorder %s76, %s79
    %p88 = scmp.eq.s32.totalorder %s19, 1
    %p89 = por %p87, %p88
    %p90 = scmp.ne.s32.totalorder %s79, %s80
    %p91 = scmp.eq.s32.totalorder %s19, 0
    %p92 = por %p90, %p91
    %p93 = scmp.ne.s32.totalorder %s79, %s80
    %p94 = scmp.eq.s32.totalorder %s20, 1
    %p95 = por %p93, %p94
    %p97 = scmp.ne.s32.totalorder %s80, %s96
    %p98 = scmp.eq.s32.totalorder %s20, 0
    %p99 = por %p97, %p98
    %s101 = sadd.s32 %s100, 1
    %p104 = scmp.eq.s32.totalorder %s14, 1
    %p105 = scmp.ne.s32.totalorder %s100, %s102
    %p106 = scmp.eq.s32.totalorder %s14, 0
    %p107 = por %p105, %p106
    %p108 = scmp.ne.s32.totalorder %s100, %s102
    %p109 = scmp.eq.s32.totalorder %s19, 1
    %p110 = por %p108, %p109
    %p111 = scmp.ne.s32.totalorder %s102, %s103
    %p112 = scmp.eq.s32.totalorder %s19, 0
    %p113 = por %p111, %p112
    %p114 = scmp.ne.s32.totalorder %s102, %s103
    %p115 = scmp.eq.s32.totalorder %s20, 1
    %p116 = por %p114, %p115
    %p118 = scmp.ne.s32.totalorder %s103, %s117
    %p119 = scmp.eq.s32.totalorder %s20, 0
    %p120 = por %p118, %p119
    %s122 = sadd.s32 %s121, 1
    %p125 = scmp.eq.s32.totalorder %s14, 1
    %p126 = scmp.ne.s32.totalorder %s121, %s123
    %p127 = scmp.eq.s32.totalorder %s14, 0
    %p128 = por %p126, %p127
    %p129 = scmp.ne.s32.totalorder %s121, %s123
    %p130 = scmp.eq.s32.totalorder %s19, 1
    %p131 = por %p129, %p130
    %p132 = scmp.ne.s32.totalorder %s123, %s124
    %p133 = scmp.eq.s32.totalorder %s19, 0
    %p134 = por %p132, %p133
    %p135 = scmp.ne.s32.totalorder %s123, %s124
    %p136 = scmp.eq.s32.totalorder %s20, 1
    %p137 = por %p135, %p136
    %p139 = scmp.ne.s32.totalorder %s124, %s138
    %p140 = scmp.eq.s32.totalorder %s20, 0
    %p141 = por %p139, %p140
    %s142 = ssub.s32 %s14, %s21
    %p143 = scmp.eq.s32.totalorder %s142, 0
    %s145 = sadd.s32 %s144, 1
    %s146 = scalar_select %p143, %s144, %s145
    %p149 = pneg %p143
    %p150 = scmp.eq.s32.totalorder %s14, 1
    %p151 = por %p149, %p150
    %p152 = scmp.ne.s32.totalorder %s144, %s147
    %p153 = scmp.eq.s32.totalorder %s14, 0
    %p154 = por %p152, %p153
    %p155 = scmp.ne.s32.totalorder %s144, %s147
    %p156 = scmp.eq.s32.totalorder %s19, 1
    %p157 = por %p155, %p156
    %p158 = scmp.ne.s32.totalorder %s147, %s148
    %p159 = scmp.eq.s32.totalorder %s19, 0
    %p160 = por %p158, %p159
    %p161 = scmp.ne.s32.totalorder %s147, %s148
    %p162 = scmp.eq.s32.totalorder %s20, 1
    %p163 = por %p161, %p162
    %p165 = scmp.ne.s32.totalorder %s148, %s164
    %p166 = scmp.eq.s32.totalorder %s20, 0
    %p167 = por %p165, %p166
    %s168 = ssub.s32 %s14, %s21
    %p169 = scmp.eq.s32.totalorder %s168, 0
    %s171 = sadd.s32 %s170, 1
    %s172 = scalar_select %p169, %s170, %s171
    %p175 = pneg %p169
    %p176 = scmp.eq.s32.totalorder %s14, 1
    %p177 = por %p175, %p176
    %p178 = scmp.ne.s32.totalorder %s170, %s173
    %p179 = scmp.eq.s32.totalorder %s14, 0
    %p180 = por %p178, %p179
    %p181 = scmp.ne.s32.totalorder %s170, %s173
    %p182 = scmp.eq.s32.totalorder %s19, 1
    %p183 = por %p181, %p182
    %p184 = scmp.ne.s32.totalorder %s173, %s174
    %p185 = scmp.eq.s32.totalorder %s19, 0
    %p186 = por %p184, %p185
    %p187 = scmp.ne.s32.totalorder %s173, %s174
    %p188 = scmp.eq.s32.totalorder %s20, 1
    %p189 = por %p187, %p188
    %p191 = scmp.ne.s32.totalorder %s174, %s190
    %p192 = scmp.eq.s32.totalorder %s20, 0
    %p193 = por %p191, %p192
    %s194 = ssub.s32 %s14, %s21
    %p195 = scmp.eq.s32.totalorder %s194, 0
    %s197 = sadd.s32 %s196, 1
    %s198 = scalar_select %p195, %s196, %s197
    %p201 = pneg %p195
    %p202 = scmp.eq.s32.totalorder %s14, 1
    %p203 = por %p201, %p202
    %p204 = scmp.ne.s32.totalorder %s196, %s199
    %p205 = scmp.eq.s32.totalorder %s14, 0
    %p206 = por %p204, %p205
    %p207 = scmp.ne.s32.totalorder %s196, %s199
    %p208 = scmp.eq.s32.totalorder %s19, 1
    %p209 = por %p207, %p208
    %p210 = scmp.ne.s32.totalorder %s199, %s200
    %p211 = scmp.eq.s32.totalorder %s19, 0
    %p212 = por %p210, %p211
    %p213 = scmp.ne.s32.totalorder %s199, %s200
    %p214 = scmp.eq.s32.totalorder %s20, 1
    %p215 = por %p213, %p214
    %p217 = scmp.ne.s32.totalorder %s200, %s216
    %p218 = scmp.eq.s32.totalorder %s20, 0
    %p219 = por %p217, %p218
    %p220 = scmp.le.s32.totalorder 1, %s14
    %p221 = scmp.lt.s32.totalorder %s14, 3
    %p222 = pnand %p220, %p221
    %p223 = pneg %p222
    // Predicated region
    $region9: #{cross_channel_attention.1} parent=5 // pred_check
      _
    $region10: #{cross_channel_attention.1} parent=5 // pred_check_branch
      %225 = sbr.rel (%p222) target = $region12
    $region11: #{cross_channel_attention.1} parent=5 // pred_region
      %s226 = ssub.s32 %s14, 1
      // Predicated region
      $region13: #{cross_channel_attention.1} parent=11 // pred_check
        %p227 = pneg %p113
      $region14: #{cross_channel_attention.1} parent=11 // pred_check_branch
        %229 = sbr.rel (%p227) target = $region16
      $region15: #{cross_channel_attention.1} parent=11 // pred_region
        _
      $region16: #{cross_channel_attention.1} parent=11 // pred_fallthru
        _
      // Predicated region
      $region17: #{cross_channel_attention.1} parent=11 // pred_check
        %p230 = pneg %p134
      $region18: #{cross_channel_attention.1} parent=11 // pred_check_branch
        %232 = sbr.rel (%p230) target = $region20
      $region19: #{cross_channel_attention.1} parent=11 // pred_region
        _
      $region20: #{cross_channel_attention.1} parent=11 // pred_fallthru
        _
    $region12: #{cross_channel_attention.1} parent=5 // pred_fallthru
      _
    %p233 = scmp.lt.s32.totalorder %s14, 2
    // Predicated region
    $region21: #{cross_channel_attention.1} parent=5 // pred_check
      %p234 = pneg %p233
    $region22: #{cross_channel_attention.1} parent=5 // pred_check_branch
      %236 = sbr.rel (%p234) target = $region24
    $region23: #{cross_channel_attention.1} parent=5 // pred_region
      // Predicated region
      $region25: #{cross_channel_attention.1} parent=23 // pred_check
        %p237 = pneg %p34
      $region26: #{cross_channel_attention.1} parent=23 // pred_check_branch
        %239 = sbr.rel (%p237) target = $region28
      $region27: #{cross_channel_attention.1} parent=23 // pred_region
        %p240 = scmp.lt.s32.totalorder %s14, 1
        %s241 = scalar_select %p240, %s14, 1
        %s242 = smul.addr %s241, 2
        %s243 = smul.addr %s242, 4
        %s244 = scalar_lea.vmem %s0, %s243
      $region28: #{cross_channel_attention.1} parent=23 // pred_fallthru
        _
      // Predicated region
      $region29: #{cross_channel_attention.1} parent=23 // pred_check
        %p245 = pneg %p60
      $region30: #{cross_channel_attention.1} parent=23 // pred_check_branch
        %247 = sbr.rel (%p245) target = $region32
      $region31: #{cross_channel_attention.1} parent=23 // pred_region
        %p248 = scmp.lt.s32.totalorder %s14, 1
        %s249 = scalar_select %p248, %s14, 1
        %s250 = smul.addr %s249, 2
        %s251 = smul.addr %s250, 4
        %s252 = scalar_lea.vmem %s1, %s251
      $region32: #{cross_channel_attention.1} parent=23 // pred_fallthru
        _
      // Predicated region
      $region33: #{cross_channel_attention.1} parent=23 // pred_check
        %p253 = pneg %p86
      $region34: #{cross_channel_attention.1} parent=23 // pred_check_branch
        %255 = sbr.rel (%p253) target = $region36
      $region35: #{cross_channel_attention.1} parent=23 // pred_region
        %p256 = scmp.lt.s32.totalorder %s14, 1
        %s257 = scalar_select %p256, %s14, 1
        %s258 = smul.addr %s257, 2
        %s259 = smul.addr %s258, 4
        %s260 = scalar_lea.vmem %s2, %s259
      $region36: #{cross_channel_attention.1} parent=23 // pred_fallthru
        _
    $region24: #{cross_channel_attention.1} parent=5 // pred_fallthru
      _
    %p261 = scmp.le.s32.totalorder 1, %s14
    %p262 = scmp.lt.s32.totalorder %s14, 3
    %p263 = pnand %p261, %p262
    %p264 = pneg %p263
    // Predicated region
    $region37: #{cross_channel_attention.1} parent=5 // pred_check
      _
    $region38: #{cross_channel_attention.1} parent=5 // pred_check_branch
      %266 = sbr.rel (%p263) target = $region40
    $region39: #{cross_channel_attention.1} parent=5 // pred_region
      %s267 = ssub.s32 %s14, 1
      %p268 = scmp.lt.s32.totalorder %s19, 1
      %s269 = scalar_select %p268, %s19, 1
      %s270 = smul.addr %s269, 2
      %s271 = smul.addr %s270, 4
      %s272 = scalar_lea.vmem %s0, %s271
      %p273 = pneg %p40
      %p274 = pneg %p37
      %p275 = scmp.lt.s32.totalorder %s19, 1
      %s276 = scalar_select %p275, %s19, 1
      %s277 = smul.addr %s276, 2
      %s278 = smul.addr %s277, 4
      %s279 = scalar_lea.vmem %s1, %s278
      %p280 = pneg %p66
      %p281 = pneg %p63
      %p282 = scmp.lt.s32.totalorder %s19, 1
      %s283 = scalar_select %p282, %s19, 1
      %s284 = smul.addr %s283, 2
      %s285 = smul.addr %s284, 4
      %s286 = scalar_lea.vmem %s2, %s285
      %p287 = pneg %p92
      %p288 = pneg %p89
      %p289 = pneg %p113
      %p290 = pneg %p110
      %p291 = pneg %p134
      %p292 = pneg %p131
      %p293 = pneg %p160
      %p294 = pneg %p157
      %p295 = scmp.lt.s32.totalorder %s19, 1
      %s296 = scalar_select %p295, %s19, 1
      %s297 = smul.addr %s296, 2
      %s298 = smul.addr %s297, 4
      %s299 = scalar_lea.vmem %s5, %s298
      %p300 = pneg %p186
      %p301 = pneg %p183
      %p302 = scmp.lt.s32.totalorder %s19, 1
      %s303 = scalar_select %p302, %s19, 1
      %s304 = smul.addr %s303, 2
      %s305 = smul.addr %s304, 4
      %s306 = scalar_lea.vmem %s6, %s305
      %p307 = pneg %p212
      %p308 = pneg %p209
      %p309 = scmp.lt.s32.totalorder %s19, 1
      %s310 = scalar_select %p309, %s19, 1
      %s311 = smul.addr %s310, 2
      %s312 = smul.addr %s311, 4
      %s313 = scalar_lea.vmem %s7, %s312
      %p314 = scmp.lt.s32.totalorder %s19, 1
      %s315 = scalar_select %p314, %s19, 1
      %s316 = smul.addr %s315, 2
      %s317 = smul.addr %s316, 4
      %s318 = scalar_lea.vmem %s0, %s317
      %p319 = scmp.lt.s32.totalorder %s19, 1
      %s320 = scalar_select %p319, %s19, 1
      %s321 = smul.addr %s320, 2
      %s322 = smul.addr %s321, 4
      %s323 = scalar_lea.vmem %s1, %s322
      %p324 = scmp.lt.s32.totalorder %s19, 1
      %s325 = scalar_select %p324, %s19, 1
      %s326 = smul.addr %s325, 2
      %s327 = smul.addr %s326, 4
      %s328 = scalar_lea.vmem %s2, %s327
      %p329 = scmp.lt.s32.totalorder %s19, 1
      %s330 = scalar_select %p329, %s19, 1
      %s331 = smul.addr %s330, 2
      %s332 = smul.addr %s331, 4
      %s333 = scalar_lea.vmem %s5, %s332
      %p334 = scmp.lt.s32.totalorder %s19, 1
      %s335 = scalar_select %p334, %s19, 1
      %s336 = smul.addr %s335, 2
      %s337 = smul.addr %s336, 4
      %s338 = scalar_lea.vmem %s6, %s337
      %p339 = scmp.lt.s32.totalorder %s19, 1
      %s340 = scalar_select %p339, %s19, 1
      %s341 = smul.addr %s340, 2
      %s342 = smul.addr %s341, 4
      %s343 = scalar_lea.vmem %s7, %s342
      %v344 = vld [vmem:[%s318] sm:$0xff]
      %v345 = vld [vmem:[%s323] sm:$0xff]
      %v346 = vld [vmem:[%s328] sm:$0xff]
      %v348 = vcombine.high %v344, %v344
      %v351 = vcombine.low %v345, %v345
      %v354 = vcombine.high %v346, %v346
      %vm355 = vcmask 1043456
      %v356 = vsel %vm355, %v344, %v351
      %v357 = vsel %vm355, %v348, %v345
      %v358 = vld [vmem:[%s3] sm:$0xff]
      %v359 = vld [vmem:[%s3 + $0x8] sm:$0xff]
      %v360 = vld [vmem:[%s3 + $0x10] sm:$0xff]
      %v361 = vld [vmem:[%s3 + $0x18] sm:$0xff]
      %v362 = vld [vmem:[%s4] sm:$0xff]
      %v363 = vld [vmem:[%s4 + $0x8] sm:$0xff]
      %v364 = vld [vmem:[%s4 + $0x10] sm:$0xff]
      %v365 = vld [vmem:[%s4 + $0x18] sm:$0xff]
      %367 = vset.pattern.permute.xlu0 0
      %368 = vperm.xlu0 %367, %v362
      %v369 = vpop.permute.xlu0 %368
      %372 = vset.pattern.permute.xlu0 0
      %373 = vperm.xlu0 %372, %v363
      %v374 = vpop.permute.xlu0 %373
      %377 = vset.pattern.permute.xlu0 0
      %378 = vperm.xlu0 %377, %v364
      %v379 = vpop.permute.xlu0 %378
      %382 = vset.pattern.permute.xlu0 0
      %383 = vperm.xlu0 %382, %v365
      %v384 = vpop.permute.xlu0 %383
      %vm386 = vcmask 97280
      %v388 = vsel %vm386, %v358, 0
      %v391 = vsel %vm386, %v359, 0
      %v394 = vsel %vm386, %v360, 0
      %v397 = vsel %vm386, %v361, 0
      %v399 = vsel %vm355, %v346, 0
      %v401 = vsel %vm355, %v354, 0
      %403 = vmatprep.subr.mxu0 %v357
      %404 = vmatpush1.msra.mxu0 %v356
      %405 = vmatprep.subr.mxu0 %v401
      %406 = vmatpush1.msra.mxu0 %v399
      %407 = vmatprep.subr.mxu0 0.0
      %408 = vmatpush1.msra.mxu0 0.0
      %409 = vmatprep.subr.mxu0 0.0
      %410 = vmatpush1.msra.mxu0 0.0
      %411 = vmatprep.subr.mxu0 0.0
      %412 = vmatpush1.msra.mxu0 0.0
      %413 = vmatprep.subr.mxu0 0.0
      %414 = vmatpush1.msra.mxu0 0.0
      %415 = vmatprep.subr.mxu0 0.0
      %416 = vmatpush1.msra.mxu0 0.0
      %417 = vmatprep.subr.mxu0 0.0
      %418 = vmatpush1.msra.mxu0 0.0
      %419 = vmatprep.subr.mxu0 0.0
      %420 = vmatpush1.msra.mxu0 0.0
      %421 = vmatprep.subr.mxu0 0.0
      %422 = vmatpush1.msra.mxu0 0.0
      %423 = vmatprep.subr.mxu0 0.0
      %424 = vmatpush1.msra.mxu0 0.0
      %425 = vmatprep.subr.mxu0 0.0
      %426 = vmatpush1.msra.mxu0 0.0
      %427 = vmatprep.subr.mxu0 0.0
      %428 = vmatpush1.msra.mxu0 0.0
      %429 = vmatprep.subr.mxu0 0.0
      %430 = vmatpush1.msra.mxu0 0.0
      %431 = vmatprep.subr.mxu0 0.0
      %432 = vmatpush1.msra.mxu0 0.0
      %433 = vmatprep.subr.mxu0 0.0
      %434 = vmatpush1.msra.mxu0 0.0
      %435 = vmatprep.subr.mxu0 0.0
      %436 = vmatpush1.msra.mxu0 0.0
      %437 = vmatprep.subr.mxu0 0.0
      %438 = vmatpush1.msra.mxu0 0.0
      %439 = vmatprep.subr.mxu0 0.0
      %440 = vmatpush1.msra.mxu0 0.0
      %441 = vmatprep.subr.mxu0 0.0
      %442 = vmatpush1.msra.mxu0 0.0
      %443 = vmatprep.subr.mxu0 0.0
      %444 = vmatpush1.msra.mxu0 0.0
      %445 = vmatprep.subr.mxu0 0.0
      %446 = vmatpush1.msra.mxu0 0.0
      %447 = vmatprep.subr.mxu0 0.0
      %448 = vmatpush1.msra.mxu0 0.0
      %449 = vmatprep.subr.mxu0 0.0
      %450 = vmatpush1.msra.mxu0 0.0
      %451 = vmatprep.subr.mxu0 0.0
      %452 = vmatpush1.msra.mxu0 0.0
      %453 = vmatprep.subr.mxu0 0.0
      %454 = vmatpush1.msra.mxu0 0.0
      %455 = vmatprep.subr.mxu0 0.0
      %456 = vmatpush1.msra.mxu0 0.0
      %457 = vmatprep.subr.mxu0 0.0
      %458 = vmatpush1.msra.mxu0 0.0
      %459 = vmatprep.subr.mxu0 0.0
      %460 = vmatpush1.msra.mxu0 0.0
      %461 = vmatprep.subr.mxu0 0.0
      %462 = vmatpush1.msra.mxu0 0.0
      %463 = vmatprep.subr.mxu0 0.0
      %464 = vmatpush1.msra.mxu0 0.0
      %465 = vmatprep.subr.mxu0 0.0
      %466 = vmatpush1.msra.mxu0 0.0
      %467 = vmatprep.mubr.f32.mxu0 0.0
      %468 = vmatmul.mubr.f32.gmra.mrb[0].mxu0 %v388
      %v469 = vpop.f32.mrb[0].mxu0
      %v470 = vadd.f32 %v369, %v469
      %v471 = vpop.f32.mrb[0].mxu0
      %v472 = vadd.f32 %v369, %v471
      %473 = vmatprep.mubr.f32.mxu0 0.0
      %474 = vmatmul.mubr.f32.gmra.mrb[0].mxu0 %v391
      %v475 = vpop.f32.mrb[0].mxu0
      %v476 = vadd.f32 %v374, %v475
      %v477 = vpop.f32.mrb[0].mxu0
      %v478 = vadd.f32 %v374, %v477
      %479 = vmatprep.mubr.f32.mxu0 0.0
      %480 = vmatmul.mubr.f32.gmra.mrb[0].mxu0 %v394
      %v481 = vpop.f32.mrb[0].mxu0
      %v482 = vadd.f32 %v379, %v481
      %v483 = vpop.f32.mrb[0].mxu0
      %v484 = vadd.f32 %v379, %v483
      %485 = vmatprep.mubr.f32.mxu0 0.0
      %486 = vmatmul.mubr.f32.gmra.mrb[0].mxu0 %v397
      %v487 = vpop.f32.mrb[0].mxu0
      %v488 = vadd.f32 %v384, %v487
      %v489 = vpop.f32.mrb[0].mxu0
      %v490 = vadd.f32 %v384, %v489
      %491 = vdwg.mxu0
      %492 = vxpose.xlu0.b32.start [1/16] %v476, 128
      %493 = vxpose.xlu0.b32.cont [2/16] 0.0, 128
      %494 = vxpose.xlu0.b32.cont [3/16] 0.0, 128
      %495 = vxpose.xlu0.b32.cont [4/16] 0.0, 128
      %496 = vxpose.xlu0.b32.cont [5/16] 0.0, 128
      %497 = vxpose.xlu0.b32.cont [6/16] 0.0, 128
      %498 = vxpose.xlu0.b32.cont [7/16] 0.0, 128
      %499 = vxpose.xlu0.b32.cont [8/16] 0.0, 128
      %500 = vxpose.xlu0.b32.cont [9/16] 0.0, 128
      %501 = vxpose.xlu0.b32.cont [10/16] 0.0, 128
      %502 = vxpose.xlu0.b32.cont [11/16] 0.0, 128
      %503 = vxpose.xlu0.b32.cont [12/16] 0.0, 128
      %504 = vxpose.xlu0.b32.cont [13/16] 0.0, 128
      %505 = vxpose.xlu0.b32.cont [14/16] 0.0, 128
      %506 = vxpose.xlu0.b32.cont [15/16] 0.0, 128
      %507 = vxpose.xlu0.b32.end [16/16] 0.0, 128
      %v508 = vpop.trf.xlu0
      %v509 = vpop.trf.xlu0
      %v510 = vpop.trf.xlu0
      %v511 = vpop.trf.xlu0
      %v512 = vpop.trf.xlu0
      %v513 = vpop.trf.xlu0
      %v514 = vpop.trf.xlu0
      %v515 = vpop.trf.xlu0
      %v516 = vpop.trf.xlu0
      %v517 = vpop.trf.xlu0
      %v518 = vpop.trf.xlu0
      %v519 = vpop.trf.xlu0
      %v520 = vpop.trf.xlu0
      %v521 = vpop.trf.xlu0
      %v522 = vpop.trf.xlu0
      %v523 = vpop.trf.xlu0
      %524 = vxpose.xlu0.b32.start [1/16] %v478, 128
      %525 = vxpose.xlu0.b32.cont [2/16] 0.0, 128
      %526 = vxpose.xlu0.b32.cont [3/16] 0.0, 128
      %527 = vxpose.xlu0.b32.cont [4/16] 0.0, 128
      %528 = vxpose.xlu0.b32.cont [5/16] 0.0, 128
      %529 = vxpose.xlu0.b32.cont [6/16] 0.0, 128
      %530 = vxpose.xlu0.b32.cont [7/16] 0.0, 128
      %531 = vxpose.xlu0.b32.cont [8/16] 0.0, 128
      %532 = vxpose.xlu0.b32.cont [9/16] 0.0, 128
      %533 = vxpose.xlu0.b32.cont [10/16] 0.0, 128
      %534 = vxpose.xlu0.b32.cont [11/16] 0.0, 128
      %535 = vxpose.xlu0.b32.cont [12/16] 0.0, 128
      %536 = vxpose.xlu0.b32.cont [13/16] 0.0, 128
      %537 = vxpose.xlu0.b32.cont [14/16] 0.0, 128
      %538 = vxpose.xlu0.b32.cont [15/16] 0.0, 128
      %539 = vxpose.xlu0.b32.end [16/16] 0.0, 128
      %v540 = vpop.trf.xlu0
      %v541 = vpop.trf.xlu0
      %v542 = vpop.trf.xlu0
      %v543 = vpop.trf.xlu0
      %v544 = vpop.trf.xlu0
      %v545 = vpop.trf.xlu0
      %v546 = vpop.trf.xlu0
      %v547 = vpop.trf.xlu0
      %v548 = vpop.trf.xlu0
      %v549 = vpop.trf.xlu0
      %v550 = vpop.trf.xlu0
      %v551 = vpop.trf.xlu0
      %v552 = vpop.trf.xlu0
      %v553 = vpop.trf.xlu0
      %v554 = vpop.trf.xlu0
      %v555 = vpop.trf.xlu0
      %vm556 = vcmask 64512
      %v558 = vsel %vm556, %v508, 0
      %v561 = vsel %vm556, %v509, 0
      %v564 = vsel %vm556, %v510, 0
      %v567 = vsel %vm556, %v511, 0
      %v570 = vsel %vm556, %v512, 0
      %v573 = vsel %vm556, %v513, 0
      %v576 = vsel %vm556, %v514, 0
      %v579 = vsel %vm556, %v515, 0
      %v582 = vsel %vm556, %v516, 0
      %v585 = vsel %vm556, %v517, 0
      %v588 = vsel %vm556, %v518, 0
      %v591 = vsel %vm556, %v519, 0
      %v594 = vsel %vm556, %v520, 0
      %v597 = vsel %vm556, %v521, 0
      %v600 = vsel %vm556, %v522, 0
      %v603 = vsel %vm556, %v523, 0
      %v606 = vsel %vm556, %v540, 0
      %v609 = vsel %vm556, %v541, 0
      %v612 = vsel %vm556, %v542, 0
      %v615 = vsel %vm556, %v543, 0
      %v618 = vsel %vm556, %v544, 0
      %v621 = vsel %vm556, %v545, 0
      %v624 = vsel %vm556, %v546, 0
      %v627 = vsel %vm556, %v547, 0
      %v630 = vsel %vm556, %v548, 0
      %v633 = vsel %vm556, %v549, 0
      %v636 = vsel %vm556, %v550, 0
      %v639 = vsel %vm556, %v551, 0
      %v642 = vsel %vm556, %v552, 0
      %v645 = vsel %vm556, %v553, 0
      %v648 = vsel %vm556, %v554, 0
      %v651 = vsel %vm556, %v555, 0
      %653 = vmatprep.subr.mxu0 %v472
      %654 = vmatpush1.msra.mxu0 %v470
      %655 = vmatprep.subr.mxu0 0.0
      %656 = vmatpush1.msra.mxu0 0.0
      %657 = vmatprep.subr.mxu0 0.0
      %658 = vmatpush1.msra.mxu0 0.0
      %659 = vmatprep.subr.mxu0 0.0
      %660 = vmatpush1.msra.mxu0 0.0
      %661 = vmatprep.subr.mxu0 0.0
      %662 = vmatpush1.msra.mxu0 0.0
      %663 = vmatprep.subr.mxu0 0.0
      %664 = vmatpush1.msra.mxu0 0.0
      %665 = vmatprep.subr.mxu0 0.0
      %666 = vmatpush1.msra.mxu0 0.0
      %667 = vmatprep.subr.mxu0 0.0
      %668 = vmatpush1.msra.mxu0 0.0
      %669 = vmatprep.subr.mxu0 0.0
      %670 = vmatpush1.msra.mxu0 0.0
      %671 = vmatprep.subr.mxu0 0.0
      %672 = vmatpush1.msra.mxu0 0.0
      %673 = vmatprep.subr.mxu0 0.0
      %674 = vmatpush1.msra.mxu0 0.0
      %675 = vmatprep.subr.mxu0 0.0
      %676 = vmatpush1.msra.mxu0 0.0
      %677 = vmatprep.subr.mxu0 0.0
      %678 = vmatpush1.msra.mxu0 0.0
      %679 = vmatprep.subr.mxu0 0.0
      %680 = vmatpush1.msra.mxu0 0.0
      %681 = vmatprep.subr.mxu0 0.0
      %682 = vmatpush1.msra.mxu0 0.0
      %683 = vmatprep.subr.mxu0 0.0
      %684 = vmatpush1.msra.mxu0 0.0
      %685 = vmatprep.subr.mxu0 0.0
      %686 = vmatpush1.msra.mxu0 0.0
      %687 = vmatprep.subr.mxu0 0.0
      %688 = vmatpush1.msra.mxu0 0.0
      %689 = vmatprep.subr.mxu0 0.0
      %690 = vmatpush1.msra.mxu0 0.0
      %691 = vmatprep.subr.mxu0 0.0
      %692 = vmatpush1.msra.mxu0 0.0
      %693 = vmatprep.subr.mxu0 0.0
      %694 = vmatpush1.msra.mxu0 0.0
      %695 = vmatprep.subr.mxu0 0.0
      %696 = vmatpush1.msra.mxu0 0.0
      %697 = vmatprep.subr.mxu0 0.0
      %698 = vmatpush1.msra.mxu0 0.0
      %699 = vmatprep.subr.mxu0 0.0
      %700 = vmatpush1.msra.mxu0 0.0
      %701 = vmatprep.subr.mxu0 0.0
      %702 = vmatpush1.msra.mxu0 0.0
      %703 = vmatprep.subr.mxu0 0.0
      %704 = vmatpush1.msra.mxu0 0.0
      %705 = vmatprep.subr.mxu0 0.0
      %706 = vmatpush1.msra.mxu0 0.0
      %707 = vmatprep.subr.mxu0 0.0
      %708 = vmatpush1.msra.mxu0 0.0
      %709 = vmatprep.subr.mxu0 0.0
      %710 = vmatpush1.msra.mxu0 0.0
      %711 = vmatprep.subr.mxu0 0.0
      %712 = vmatpush1.msra.mxu0 0.0
      %713 = vmatprep.subr.mxu0 0.0
      %714 = vmatpush1.msra.mxu0 0.0
      %715 = vmatprep.subr.mxu0 0.0
      %716 = vmatpush1.msra.mxu0 0.0
      %717 = vmatprep.mubr.f32.mxu0 0.0
      %718 = vmatmul.mubr.f32.gmra.mrb[0].mxu0 %v558
      %v719 = vpop.f32.mrb[0].mxu0
      %v720 = vadd.f32 0.0, %v719
      %v721 = vpop.f32.mrb[0].mxu0
      %v722 = vadd.f32 0.0, %v721
      %723 = vmatprep.mubr.f32.mxu0 0.0
      %724 = vmatmul.mubr.f32.gmra.mrb[0].mxu0 %v561
      %v725 = vpop.f32.mrb[0].mxu0
      %v726 = vadd.f32 0.0, %v725
      %v727 = vpop.f32.mrb[0].mxu0
      %v728 = vadd.f32 0.0, %v727
      %729 = vmatprep.mubr.f32.mxu0 0.0
      %730 = vmatmul.mubr.f32.gmra.mrb[0].mxu0 %v564
      %v731 = vpop.f32.mrb[0].mxu0
      %v732 = vadd.f32 0.0, %v731
      %v733 = vpop.f32.mrb[0].mxu0
      %v734 = vadd.f32 0.0, %v733
      %735 = vmatprep.mubr.f32.mxu0 0.0
      %736 = vmatmul.mubr.f32.gmra.mrb[0].mxu0 %v567
      %v737 = vpop.f32.mrb[0].mxu0
      %v738 = vadd.f32 0.0, %v737
      %v739 = vpop.f32.mrb[0].mxu0
      %v740 = vadd.f32 0.0, %v739
      %741 = vmatprep.mubr.f32.mxu0 0.0
      %742 = vmatmul.mubr.f32.gmra.mrb[0].mxu0 %v570
      %v743 = vpop.f32.mrb[0].mxu0
      %v744 = vadd.f32 0.0, %v743
      %v745 = vpop.f32.mrb[0].mxu0
      %v746 = vadd.f32 0.0, %v745
      %747 = vmatprep.mubr.f32.mxu0 0.0
      %748 = vmatmul.mubr.f32.gmra.mrb[0].mxu0 %v573
      %v749 = vpop.f32.mrb[0].mxu0
      %v750 = vadd.f32 0.0, %v749
      %v751 = vpop.f32.mrb[0].mxu0
      %v752 = vadd.f32 0.0, %v751
      %753 = vmatprep.mubr.f32.mxu0 0.0
      %754 = vmatmul.mubr.f32.gmra.mrb[0].mxu0 %v576
      %v755 = vpop.f32.mrb[0].mxu0
      %v756 = vadd.f32 0.0, %v755
      %v757 = vpop.f32.mrb[0].mxu0
      %v758 = vadd.f32 0.0, %v757
      %759 = vmatprep.mubr.f32.mxu0 0.0
      %760 = vmatmul.mubr.f32.gmra.mrb[0].mxu0 %v579
      %v761 = vpop.f32.mrb[0].mxu0
      %v762 = vadd.f32 0.0, %v761
      %v763 = vpop.f32.mrb[0].mxu0
      %v764 = vadd.f32 0.0, %v763
      %765 = vmatprep.mubr.f32.mxu0 0.0
      %766 = vmatmul.mubr.f32.gmra.mrb[0].mxu0 %v582
      %v767 = vpop.f32.mrb[0].mxu0
      %v768 = vadd.f32 0.0, %v767
      %v769 = vpop.f32.mrb[0].mxu0
      %v770 = vadd.f32 0.0, %v769
      %771 = vmatprep.mubr.f32.mxu0 0.0
      %772 = vmatmul.mubr.f32.gmra.mrb[0].mxu0 %v585
      %v773 = vpop.f32.mrb[0].mxu0
      %v774 = vadd.f32 0.0, %v773
      %v775 = vpop.f32.mrb[0].mxu0
      %v776 = vadd.f32 0.0, %v775
      %777 = vmatprep.mubr.f32.mxu0 0.0
      %778 = vmatmul.mubr.f32.gmra.mrb[0].mxu0 %v588
      %v779 = vpop.f32.mrb[0].mxu0
      %v780 = vadd.f32 0.0, %v779
      %v781 = vpop.f32.mrb[0].mxu0
      %v782 = vadd.f32 0.0, %v781
      %783 = vmatprep.mubr.f32.mxu0 0.0
      %784 = vmatmul.mubr.f32.gmra.mrb[0].mxu0 %v591
      %v785 = vpop.f32.mrb[0].mxu0
      %v786 = vadd.f32 0.0, %v785
      %v787 = vpop.f32.mrb[0].mxu0
      %v788 = vadd.f32 0.0, %v787
      %789 = vmatprep.mubr.f32.mxu0 0.0
      %790 = vmatmul.mubr.f32.gmra.mrb[0].mxu0 %v594
      %v791 = vpop.f32.mrb[0].mxu0
      %v792 = vadd.f32 0.0, %v791
      %v793 = vpop.f32.mrb[0].mxu0
      %v794 = vadd.f32 0.0, %v793
      %795 = vmatprep.mubr.f32.mxu0 0.0
      %796 = vmatmul.mubr.f32.gmra.mrb[0].mxu0 %v597
      %v797 = vpop.f32.mrb[0].mxu0
      %v798 = vadd.f32 0.0, %v797
      %v799 = vpop.f32.mrb[0].mxu0
      %v800 = vadd.f32 0.0, %v799
      %801 = vmatprep.mubr.f32.mxu0 0.0
      %802 = vmatmul.mubr.f32.gmra.mrb[0].mxu0 %v600
      %v803 = vpop.f32.mrb[0].mxu0
      %v804 = vadd.f32 0.0, %v803
      %v805 = vpop.f32.mrb[0].mxu0
      %v806 = vadd.f32 0.0, %v805
      %807 = vmatprep.mubr.f32.mxu0 0.0
      %808 = vmatmul.mubr.f32.gmra.mrb[0].mxu0 %v603
      %v809 = vpop.f32.mrb[0].mxu0
      %v810 = vadd.f32 0.0, %v809
      %v811 = vpop.f32.mrb[0].mxu0
      %v812 = vadd.f32 0.0, %v811
      %813 = vmatprep.mubr.f32.mxu0 0.0
      %814 = vmatmul.mubr.f32.gmra.mrb[0].mxu0 %v606
      %v815 = vpop.f32.mrb[0].mxu0
      %v816 = vadd.f32 0.0, %v815
      %v817 = vpop.f32.mrb[0].mxu0
      %v818 = vadd.f32 0.0, %v817
      %819 = vmatprep.mubr.f32.mxu0 0.0
      %820 = vmatmul.mubr.f32.gmra.mrb[0].mxu0 %v609
      %v821 = vpop.f32.mrb[0].mxu0
      %v822 = vadd.f32 0.0, %v821
      %v823 = vpop.f32.mrb[0].mxu0
      %v824 = vadd.f32 0.0, %v823
      %825 = vmatprep.mubr.f32.mxu0 0.0
      %826 = vmatmul.mubr.f32.gmra.mrb[0].mxu0 %v612
      %v827 = vpop.f32.mrb[0].mxu0
      %v828 = vadd.f32 0.0, %v827
      %v829 = vpop.f32.mrb[0].mxu0
      %v830 = vadd.f32 0.0, %v829
      %831 = vmatprep.mubr.f32.mxu0 0.0
      %832 = vmatmul.mubr.f32.gmra.mrb[0].mxu0 %v615
      %v833 = vpop.f32.mrb[0].mxu0
      %v834 = vadd.f32 0.0, %v833
      %v835 = vpop.f32.mrb[0].mxu0
      %v836 = vadd.f32 0.0, %v835
      %837 = vmatprep.mubr.f32.mxu0 0.0
      %838 = vmatmul.mubr.f32.gmra.mrb[0].mxu0 %v618
      %v839 = vpop.f32.mrb[0].mxu0
      %v840 = vadd.f32 0.0, %v839
      %v841 = vpop.f32.mrb[0].mxu0
      %v842 = vadd.f32 0.0, %v841
      %843 = vmatprep.mubr.f32.mxu0 0.0
      %844 = vmatmul.mubr.f32.gmra.mrb[0].mxu0 %v621
      %v845 = vpop.f32.mrb[0].mxu0
      %v846 = vadd.f32 0.0, %v845
      %v847 = vpop.f32.mrb[0].mxu0
      %v848 = vadd.f32 0.0, %v847
      %849 = vmatprep.mubr.f32.mxu0 0.0
      %850 = vmatmul.mubr.f32.gmra.mrb[0].mxu0 %v624
      %v851 = vpop.f32.mrb[0].mxu0
      %v852 = vadd.f32 0.0, %v851
      %v853 = vpop.f32.mrb[0].mxu0
      %v854 = vadd.f32 0.0, %v853
      %855 = vmatprep.mubr.f32.mxu0 0.0
      %856 = vmatmul.mubr.f32.gmra.mrb[0].mxu0 %v627
      %v857 = vpop.f32.mrb[0].mxu0
      %v858 = vadd.f32 0.0, %v857
      %v859 = vpop.f32.mrb[0].mxu0
      %v860 = vadd.f32 0.0, %v859
      %861 = vmatprep.mubr.f32.mxu0 0.0
      %862 = vmatmul.mubr.f32.gmra.mrb[0].mxu0 %v630
      %v863 = vpop.f32.mrb[0].mxu0
      %v864 = vadd.f32 0.0, %v863
      %v865 = vpop.f32.mrb[0].mxu0
      %v866 = vadd.f32 0.0, %v865
      %867 = vmatprep.mubr.f32.mxu0 0.0
      %868 = vmatmul.mubr.f32.gmra.mrb[0].mxu0 %v633
      %v869 = vpop.f32.mrb[0].mxu0
      %v870 = vadd.f32 0.0, %v869
      %v871 = vpop.f32.mrb[0].mxu0
      %v872 = vadd.f32 0.0, %v871
      %873 = vmatprep.mubr.f32.mxu0 0.0
      %874 = vmatmul.mubr.f32.gmra.mrb[0].mxu0 %v636
      %v875 = vpop.f32.mrb[0].mxu0
      %v876 = vadd.f32 0.0, %v875
      %v877 = vpop.f32.mrb[0].mxu0
      %v878 = vadd.f32 0.0, %v877
      %879 = vmatprep.mubr.f32.mxu0 0.0
      %880 = vmatmul.mubr.f32.gmra.mrb[0].mxu0 %v639
      %v881 = vpop.f32.mrb[0].mxu0
      %v882 = vadd.f32 0.0, %v881
      %v883 = vpop.f32.mrb[0].mxu0
      %v884 = vadd.f32 0.0, %v883
      %885 = vmatprep.mubr.f32.mxu0 0.0
      %886 = vmatmul.mubr.f32.gmra.mrb[0].mxu0 %v642
      %v887 = vpop.f32.mrb[0].mxu0
      %v888 = vadd.f32 0.0, %v887
      %v889 = vpop.f32.mrb[0].mxu0
      %v890 = vadd.f32 0.0, %v889
      %891 = vmatprep.mubr.f32.mxu0 0.0
      %892 = vmatmul.mubr.f32.gmra.mrb[0].mxu0 %v645
      %v893 = vpop.f32.mrb[0].mxu0
      %v894 = vadd.f32 0.0, %v893
      %v895 = vpop.f32.mrb[0].mxu0
      %v896 = vadd.f32 0.0, %v895
      %897 = vmatprep.mubr.f32.mxu0 0.0
      %898 = vmatmul.mubr.f32.gmra.mrb[0].mxu0 %v648
      %v899 = vpop.f32.mrb[0].mxu0
      %v900 = vadd.f32 0.0, %v899
      %v901 = vpop.f32.mrb[0].mxu0
      %v902 = vadd.f32 0.0, %v901
      %903 = vmatprep.mubr.f32.mxu0 0.0
      %904 = vmatmul.mubr.f32.gmra.mrb[0].mxu0 %v651
      %v905 = vpop.f32.mrb[0].mxu0
      %v906 = vadd.f32 0.0, %v905
      %v907 = vpop.f32.mrb[0].mxu0
      %v908 = vadd.f32 0.0, %v907
      %909 = vdwg.mxu0
      %v910 = vmax.f32 %v720, %v732
      %v911 = vmax.f32 %v726, %v738
      %v912 = vmax.f32 %v910, %v744
      %v913 = vmax.f32 %v911, %v750
      %v914 = vmax.f32 %v912, %v756
      %v915 = vmax.f32 %v913, %v762
      %v916 = vmax.f32 %v914, %v768
      %v917 = vmax.f32 %v915, %v774
      %v918 = vmax.f32 %v916, %v780
      %v919 = vmax.f32 %v917, %v786
      %v920 = vmax.f32 %v918, %v792
      %v921 = vmax.f32 %v919, %v798
      %v922 = vmax.f32 %v920, %v804
      %v923 = vmax.f32 %v921, %v810
      %v924 = vmax.f32 %v922, %v816
      %v925 = vmax.f32 %v923, %v822
      %v926 = vmax.f32 %v924, %v828
      %v927 = vmax.f32 %v925, %v834
      %v928 = vmax.f32 %v926, %v840
      %v929 = vmax.f32 %v927, %v846
      %v930 = vmax.f32 %v928, %v852
      %v931 = vmax.f32 %v929, %v858
      %v932 = vmax.f32 %v930, %v864
      %v933 = vmax.f32 %v931, %v870
      %v934 = vmax.f32 %v932, %v876
      %v935 = vmax.f32 %v933, %v882
      %v936 = vmax.f32 %v934, %v888
      %v937 = vmax.f32 %v935, %v894
      %v938 = vmax.f32 %v936, %v900
      %v939 = vmax.f32 %v937, %v906
      %v940 = vmax.f32 %v938, %v939
      %v941 = vrot.slane %v940, 4
      %v942 = vmax.f32 %v940, %v941
      %v943 = vrot.slane %v942, 2
      %v944 = vmax.f32 %v942, %v943
      %v945 = vrot.slane %v944, 1
      %v946 = vmax.f32 %v944, %v945
      %v947 = vmax.f32 %v722, %v734
      %v948 = vmax.f32 %v728, %v740
      %v949 = vmax.f32 %v947, %v746
      %v950 = vmax.f32 %v948, %v752
      %v951 = vmax.f32 %v949, %v758
      %v952 = vmax.f32 %v950, %v764
      %v953 = vmax.f32 %v951, %v770
      %v954 = vmax.f32 %v952, %v776
      %v955 = vmax.f32 %v953, %v782
      %v956 = vmax.f32 %v954, %v788
      %v957 = vmax.f32 %v955, %v794
      %v958 = vmax.f32 %v956, %v800
      %v959 = vmax.f32 %v957, %v806
      %v960 = vmax.f32 %v958, %v812
      %v961 = vmax.f32 %v959, %v818
      %v962 = vmax.f32 %v960, %v824
      %v963 = vmax.f32 %v961, %v830
      %v964 = vmax.f32 %v962, %v836
      %v965 = vmax.f32 %v963, %v842
      %v966 = vmax.f32 %v964, %v848
      %v967 = vmax.f32 %v965, %v854
      %v968 = vmax.f32 %v966, %v860
      %v969 = vmax.f32 %v967, %v866
      %v970 = vmax.f32 %v968, %v872
      %v971 = vmax.f32 %v969, %v878
      %v972 = vmax.f32 %v970, %v884
      %v973 = vmax.f32 %v971, %v890
      %v974 = vmax.f32 %v972, %v896
      %v975 = vmax.f32 %v973, %v902
      %v976 = vmax.f32 %v974, %v908
      %v977 = vmax.f32 %v975, %v976
      %v978 = vrot.slane %v977, 4
      %v979 = vmax.f32 %v977, %v978
      %v980 = vrot.slane %v979, 2
      %v981 = vmax.f32 %v979, %v980
      %v982 = vrot.slane %v981, 1
      %v983 = vmax.f32 %v981, %v982
      %v984 = vsub.f32 %v720, %v946
      %v985 = vsub.f32 %v722, %v983
      %v986 = vsub.f32 %v726, %v946
      %v987 = vsub.f32 %v728, %v983
      %v988 = vsub.f32 %v732, %v946
      %v989 = vsub.f32 %v734, %v983
      %v990 = vsub.f32 %v738, %v946
      %v991 = vsub.f32 %v740, %v983
      %v992 = vsub.f32 %v744, %v946
      %v993 = vsub.f32 %v746, %v983
      %v994 = vsub.f32 %v750, %v946
      %v995 = vsub.f32 %v752, %v983
      %v996 = vsub.f32 %v756, %v946
      %v997 = vsub.f32 %v758, %v983
      %v998 = vsub.f32 %v762, %v946
      %v999 = vsub.f32 %v764, %v983
      %v1000 = vsub.f32 %v768, %v946
      %v1001 = vsub.f32 %v770, %v983
      %v1002 = vsub.f32 %v774, %v946
      %v1003 = vsub.f32 %v776, %v983
      %v1004 = vsub.f32 %v780, %v946
      %v1005 = vsub.f32 %v782, %v983
      %v1006 = vsub.f32 %v786, %v946
      %v1007 = vsub.f32 %v788, %v983
      %v1008 = vsub.f32 %v792, %v946
      %v1009 = vsub.f32 %v794, %v983
      %v1010 = vsub.f32 %v798, %v946
      %v1011 = vsub.f32 %v800, %v983
      %v1012 = vsub.f32 %v804, %v946
      %v1013 = vsub.f32 %v806, %v983
      %v1014 = vsub.f32 %v810, %v946
      %v1015 = vsub.f32 %v812, %v983
      %v1016 = vsub.f32 %v816, %v946
      %v1017 = vsub.f32 %v818, %v983
      %v1018 = vsub.f32 %v822, %v946
      %v1019 = vsub.f32 %v824, %v983
      %v1020 = vsub.f32 %v828, %v946
      %v1021 = vsub.f32 %v830, %v983
      %v1022 = vsub.f32 %v834, %v946
      %v1023 = vsub.f32 %v836, %v983
      %v1024 = vsub.f32 %v840, %v946
      %v1025 = vsub.f32 %v842, %v983
      %v1026 = vsub.f32 %v846, %v946
      %v1027 = vsub.f32 %v848, %v983
      %v1028 = vsub.f32 %v852, %v946
      %v1029 = vsub.f32 %v854, %v983
      %v1030 = vsub.f32 %v858, %v946
      %v1031 = vsub.f32 %v860, %v983
      %v1032 = vsub.f32 %v864, %v946
      %v1033 = vsub.f32 %v866, %v983
      %v1034 = vsub.f32 %v870, %v946
      %v1035 = vsub.f32 %v872, %v983
      %v1036 = vsub.f32 %v876, %v946
      %v1037 = vsub.f32 %v878, %v983
      %v1038 = vsub.f32 %v882, %v946
      %v1039 = vsub.f32 %v884, %v983
      %v1040 = vsub.f32 %v888, %v946
      %v1041 = vsub.f32 %v890, %v983
      %v1042 = vsub.f32 %v894, %v946
      %v1043 = vsub.f32 %v896, %v983
      %v1044 = vsub.f32 %v900, %v946
      %v1045 = vsub.f32 %v902, %v983
      %v1046 = vsub.f32 %v906, %v946
      %v1047 = vsub.f32 %v908, %v983
      %v1048 = vmul.f32 %v984, 1.442695
      %v1049 = vpow.pop %v1048
      %v1050 = vmul.f32 %v985, 1.442695
      %v1051 = vpow.pop %v1050
      %v1052 = vmul.f32 %v986, 1.442695
      %v1053 = vpow.pop %v1052
      %v1054 = vmul.f32 %v987, 1.442695
      %v1055 = vpow.pop %v1054
      %v1056 = vmul.f32 %v988, 1.442695
      %v1057 = vpow.pop %v1056
      %v1058 = vmul.f32 %v989, 1.442695
      %v1059 = vpow.pop %v1058
      %v1060 = vmul.f32 %v990, 1.442695
      %v1061 = vpow.pop %v1060
      %v1062 = vmul.f32 %v991, 1.442695
      %v1063 = vpow.pop %v1062
      %v1064 = vmul.f32 %v992, 1.442695
      %v1065 = vpow.pop %v1064
      %v1066 = vmul.f32 %v993, 1.442695
      %v1067 = vpow.pop %v1066
      %v1068 = vmul.f32 %v994, 1.442695
      %v1069 = vpow.pop %v1068
      %v1070 = vmul.f32 %v995, 1.442695
      %v1071 = vpow.pop %v1070
      %v1072 = vmul.f32 %v996, 1.442695
      %v1073 = vpow.pop %v1072
      %v1074 = vmul.f32 %v997, 1.442695
      %v1075 = vpow.pop %v1074
      %v1076 = vmul.f32 %v998, 1.442695
      %v1077 = vpow.pop %v1076
      %v1078 = vmul.f32 %v999, 1.442695
      %v1079 = vpow.pop %v1078
      %v1080 = vmul.f32 %v1000, 1.442695
      %v1081 = vpow.pop %v1080
      %v1082 = vmul.f32 %v1001, 1.442695
      %v1083 = vpow.pop %v1082
      %v1084 = vmul.f32 %v1002, 1.442695
      %v1085 = vpow.pop %v1084
      %v1086 = vmul.f32 %v1003, 1.442695
      %v1087 = vpow.pop %v1086
      %v1088 = vmul.f32 %v1004, 1.442695
      %v1089 = vpow.pop %v1088
      %v1090 = vmul.f32 %v1005, 1.442695
      %v1091 = vpow.pop %v1090
      %v1092 = vmul.f32 %v1006, 1.442695
      %v1093 = vpow.pop %v1092
      %v1094 = vmul.f32 %v1007, 1.442695
      %v1095 = vpow.pop %v1094
      %v1096 = vmul.f32 %v1008, 1.442695
      %v1097 = vpow.pop %v1096
      %v1098 = vmul.f32 %v1009, 1.442695
      %v1099 = vpow.pop %v1098
      %v1100 = vmul.f32 %v1010, 1.442695
      %v1101 = vpow.pop %v1100
      %v1102 = vmul.f32 %v1011, 1.442695
      %v1103 = vpow.pop %v1102
      %v1104 = vmul.f32 %v1012, 1.442695
      %v1105 = vpow.pop %v1104
      %v1106 = vmul.f32 %v1013, 1.442695
      %v1107 = vpow.pop %v1106
      %v1108 = vmul.f32 %v1014, 1.442695
      %v1109 = vpow.pop %v1108
      %v1110 = vmul.f32 %v1015, 1.442695
      %v1111 = vpow.pop %v1110
      %v1112 = vmul.f32 %v1016, 1.442695
      %v1113 = vpow.pop %v1112
      %v1114 = vmul.f32 %v1017, 1.442695
      %v1115 = vpow.pop %v1114
      %v1116 = vmul.f32 %v1018, 1.442695
      %v1117 = vpow.pop %v1116
      %v1118 = vmul.f32 %v1019, 1.442695
      %v1119 = vpow.pop %v1118
      %v1120 = vmul.f32 %v1020, 1.442695
      %v1121 = vpow.pop %v1120
      %v1122 = vmul.f32 %v1021, 1.442695
      %v1123 = vpow.pop %v1122
      %v1124 = vmul.f32 %v1022, 1.442695
      %v1125 = vpow.pop %v1124
      %v1126 = vmul.f32 %v1023, 1.442695
      %v1127 = vpow.pop %v1126
      %v1128 = vmul.f32 %v1024, 1.442695
      %v1129 = vpow.pop %v1128
      %v1130 = vmul.f32 %v1025, 1.442695
      %v1131 = vpow.pop %v1130
      %v1132 = vmul.f32 %v1026, 1.442695
      %v1133 = vpow.pop %v1132
      %v1134 = vmul.f32 %v1027, 1.442695
      %v1135 = vpow.pop %v1134
      %v1136 = vmul.f32 %v1028, 1.442695
      %v1137 = vpow.pop %v1136
      %v1138 = vmul.f32 %v1029, 1.442695
      %v1139 = vpow.pop %v1138
      %v1140 = vmul.f32 %v1030, 1.442695
      %v1141 = vpow.pop %v1140
      %v1142 = vmul.f32 %v1031, 1.442695
      %v1143 = vpow.pop %v1142
      %v1144 = vmul.f32 %v1032, 1.442695
      %v1145 = vpow.pop %v1144
      %v1146 = vmul.f32 %v1033, 1.442695
      %v1147 = vpow.pop %v1146
      %v1148 = vmul.f32 %v1034, 1.442695
      %v1149 = vpow.pop %v1148
      %v1150 = vmul.f32 %v1035, 1.442695
      %v1151 = vpow.pop %v1150
      %v1152 = vmul.f32 %v1036, 1.442695
      %v1153 = vpow.pop %v1152
      %v1154 = vmul.f32 %v1037, 1.442695
      %v1155 = vpow.pop %v1154
      %v1156 = vmul.f32 %v1038, 1.442695
      %v1157 = vpow.pop %v1156
      %v1158 = vmul.f32 %v1039, 1.442695
      %v1159 = vpow.pop %v1158
      %v1160 = vmul.f32 %v1040, 1.442695
      %v1161 = vpow.pop %v1160
      %v1162 = vmul.f32 %v1041, 1.442695
      %v1163 = vpow.pop %v1162
      %v1164 = vmul.f32 %v1042, 1.442695
      %v1165 = vpow.pop %v1164
      %v1166 = vmul.f32 %v1043, 1.442695
      %v1167 = vpow.pop %v1166
      %v1168 = vmul.f32 %v1044, 1.442695
      %v1169 = vpow.pop %v1168
      %v1170 = vmul.f32 %v1045, 1.442695
      %v1171 = vpow.pop %v1170
      %v1172 = vmul.f32 %v1046, 1.442695
      %v1173 = vpow.pop %v1172
      %v1174 = vmul.f32 %v1047, 1.442695
      %v1175 = vpow.pop %v1174
      %1176 = vmatprep.subr.mxu0 %v1051
      %1177 = vmatpush1.msra.mxu0 %v1049
      %1178 = vmatprep.subr.mxu0 %v1055
      %1179 = vmatpush1.msra.mxu0 %v1053
      %1180 = vmatprep.subr.mxu0 %v1059
      %1181 = vmatpush1.msra.mxu0 %v1057
      %1182 = vmatprep.subr.mxu0 %v1063
      %1183 = vmatpush1.msra.mxu0 %v1061
      %1184 = vmatprep.subr.mxu0 %v1067
      %1185 = vmatpush1.msra.mxu0 %v1065
      %1186 = vmatprep.subr.mxu0 %v1071
      %1187 = vmatpush1.msra.mxu0 %v1069
      %1188 = vmatprep.subr.mxu0 %v1075
      %1189 = vmatpush1.msra.mxu0 %v1073
      %1190 = vmatprep.subr.mxu0 %v1079
      %1191 = vmatpush1.msra.mxu0 %v1077
      %1192 = vmatprep.subr.mxu0 %v1083
      %1193 = vmatpush1.msra.mxu0 %v1081
      %1194 = vmatprep.subr.mxu0 %v1087
      %1195 = vmatpush1.msra.mxu0 %v1085
      %1196 = vmatprep.subr.mxu0 %v1091
      %1197 = vmatpush1.msra.mxu0 %v1089
      %1198 = vmatprep.subr.mxu0 %v1095
      %1199 = vmatpush1.msra.mxu0 %v1093
      %1200 = vmatprep.subr.mxu0 %v1099
      %1201 = vmatpush1.msra.mxu0 %v1097
      %1202 = vmatprep.subr.mxu0 %v1103
      %1203 = vmatpush1.msra.mxu0 %v1101
      %1204 = vmatprep.subr.mxu0 %v1107
      %1205 = vmatpush1.msra.mxu0 %v1105
      %1206 = vmatprep.subr.mxu0 %v1111
      %1207 = vmatpush1.msra.mxu0 %v1109
      %1208 = vmatprep.subr.mxu0 %v1115
      %1209 = vmatpush1.msra.mxu0 %v1113
      %1210 = vmatprep.subr.mxu0 %v1119
      %1211 = vmatpush1.msra.mxu0 %v1117
      %1212 = vmatprep.subr.mxu0 %v1123
      %1213 = vmatpush1.msra.mxu0 %v1121
      %1214 = vmatprep.subr.mxu0 %v1127
      %1215 = vmatpush1.msra.mxu0 %v1125
      %1216 = vmatprep.subr.mxu0 %v1131
      %1217 = vmatpush1.msra.mxu0 %v1129
      %1218 = vmatprep.subr.mxu0 %v1135
      %1219 = vmatpush1.msra.mxu0 %v1133
      %1220 = vmatprep.subr.mxu0 %v1139
      %1221 = vmatpush1.msra.mxu0 %v1137
      %1222 = vmatprep.subr.mxu0 %v1143
      %1223 = vmatpush1.msra.mxu0 %v1141
      %1224 = vmatprep.subr.mxu0 %v1147
      %1225 = vmatpush1.msra.mxu0 %v1145
      %1226 = vmatprep.subr.mxu0 %v1151
      %1227 = vmatpush1.msra.mxu0 %v1149
      %1228 = vmatprep.subr.mxu0 %v1155
      %1229 = vmatpush1.msra.mxu0 %v1153
      %1230 = vmatprep.subr.mxu0 %v1159
      %1231 = vmatpush1.msra.mxu0 %v1157
      %1232 = vmatprep.subr.mxu0 %v1163
      %1233 = vmatpush1.msra.mxu0 %v1161
      %1234 = vmatprep.subr.mxu0 %v1167
      %1235 = vmatpush1.msra.mxu0 %v1165
      %1236 = vmatprep.subr.mxu0 %v1171
      %1237 = vmatpush1.msra.mxu0 %v1169
      %1238 = vmatprep.subr.mxu0 %v1175
      %1239 = vmatpush1.msra.mxu0 %v1173
      %1240 = vmatprep.mubr.f32.mxu0 %v484
      %1241 = vmatmul.mubr.f32.gmra.mrb[0].mxu0 %v482
      %v1242 = vpop.f32.mrb[0].mxu0
      %v1243 = vadd.f32 0.0, %v1242
      %v1244 = vpop.f32.mrb[0].mxu0
      %v1245 = vadd.f32 0.0, %v1244
      %1246 = vmatprep.mubr.f32.mxu0 %v490
      %1247 = vmatmul.mubr.f32.gmra.mrb[0].mxu0 %v488
      %v1248 = vpop.f32.mrb[0].mxu0
      %v1249 = vadd.f32 0.0, %v1248
      %v1250 = vpop.f32.mrb[0].mxu0
      %v1251 = vadd.f32 0.0, %v1250
      %1252 = vdwg.mxu0
      %v1253 = vrcp.pop %v1249
      %v1254 = vmul.f32 1.0, %v1253
      %v1255 = vrcp.pop %v1251
      %v1256 = vmul.f32 1.0, %v1255
      %v1257 = vlaneseq
      %v1258 = vshrl.u32 %v1257, 7
      %v1259 = vsub.s32 4, %v1258
      %v1260 = vrot.slane %v1254, %v1259
      %v1261 = vlaneseq
      %v1262 = vshrl.u32 %v1261, 7
      %v1263 = vsub.s32 4, %v1262
      %v1264 = vrot.slane %v1256, %v1263
      %v1265 = vmul.f32 %v1243, %v1260
      %v1266 = vmul.f32 %v1245, %v1264
      %v1269 = vcombine.low %v1265, %v1266
      %v1271 = vadd.f32 %v344, %v1269
      %1272 = vst [vmem:[%s333] sm:$0xff] %v1271
      %v1273 = vcombine.high %v1265, %v1266
      %v1275 = vadd.f32 %v345, %v1273
      %1276 = vst [vmem:[%s338] sm:$0xff] %v1275
      %v1277 = vmul.f32 %v1249, %v1260
      %v1278 = vmul.f32 %v1251, %v1264
      %v1281 = vcombine.low %v1277, %v1278
      %v1283 = vadd.f32 %v346, %v1281
      %1284 = vst [vmem:[%s343] sm:$0xff] %v1283
      %p1285 = scmp.lt.s32.totalorder %s19, 1
      %s1286 = scalar_select %p1285, %s19, 1
      %s1287 = smul.addr %s1286, 2
      %s1288 = smul.addr %s1287, 4
      %s1289 = scalar_lea.vmem %s5, %s1288
      %p1290 = scmp.lt.s32.totalorder %s19, 1
      %s1291 = scalar_select %p1290, %s19, 1
      %s1292 = smul.addr %s1291, 2
      %s1293 = smul.addr %s1292, 4
      %s1294 = scalar_lea.vmem %s6, %s1293
      %p1295 = scmp.lt.s32.totalorder %s19, 1
      %s1296 = scalar_select %p1295, %s19, 1
      %s1297 = smul.addr %s1296, 2
      %s1298 = smul.addr %s1297, 4
      %s1299 = scalar_lea.vmem %s7, %s1298
      // Predicated region
      $region41: #{cross_channel_attention.1} parent=39 // pred_check
        %p1300 = pneg %p157
      $region42: #{cross_channel_attention.1} parent=39 // pred_check_branch
        %1302 = sbr.rel (%p1300) target = $region44
      $region43: #{cross_channel_attention.1} parent=39 // pred_region
        _
      $region44: #{cross_channel_attention.1} parent=39 // pred_fallthru
        _
      // Predicated region
      $region45: #{cross_channel_attention.1} parent=39 // pred_check
        %p1303 = pneg %p183
      $region46: #{cross_channel_attention.1} parent=39 // pred_check_branch
        %1305 = sbr.rel (%p1303) target = $region48
      $region47: #{cross_channel_attention.1} parent=39 // pred_region
        _
      $region48: #{cross_channel_attention.1} parent=39 // pred_fallthru
        _
      // Predicated region
      $region49: #{cross_channel_attention.1} parent=39 // pred_check
        %p1306 = pneg %p209
      $region50: #{cross_channel_attention.1} parent=39 // pred_check_branch
        %1308 = sbr.rel (%p1306) target = $region52
      $region51: #{cross_channel_attention.1} parent=39 // pred_region
        _
      $region52: #{cross_channel_attention.1} parent=39 // pred_fallthru
        _
    $region40: #{cross_channel_attention.1} parent=5 // pred_fallthru
      _
    %p1309 = scmp.le.s32.totalorder 2, %s14
    // Predicated region
    $region53: #{cross_channel_attention.1} parent=5 // pred_check
      %p1310 = pneg %p1309
    $region54: #{cross_channel_attention.1} parent=5 // pred_check_branch
      %1312 = sbr.rel (%p1310) target = $region56
    $region55: #{cross_channel_attention.1} parent=5 // pred_region
      %s1313 = ssub.s32 %s14, 2
      // Predicated region
      $region57: #{cross_channel_attention.1} parent=55 // pred_check
        %p1314 = pneg %p163
      $region58: #{cross_channel_attention.1} parent=55 // pred_check_branch
        %1316 = sbr.rel (%p1314) target = $region60
      $region59: #{cross_channel_attention.1} parent=55 // pred_region
        %p1317 = scmp.lt.s32.totalorder %s20, 1
        %s1318 = scalar_select %p1317, %s20, 1
        %s1319 = smul.addr %s1318, 2
        %s1320 = smul.addr %s1319, 4
        %s1321 = scalar_lea.vmem %s5, %s1320
      $region60: #{cross_channel_attention.1} parent=55 // pred_fallthru
        _
      // Predicated region
      $region61: #{cross_channel_attention.1} parent=55 // pred_check
        %p1322 = pneg %p189
      $region62: #{cross_channel_attention.1} parent=55 // pred_check_branch
        %1324 = sbr.rel (%p1322) target = $region64
      $region63: #{cross_channel_attention.1} parent=55 // pred_region
        %p1325 = scmp.lt.s32.totalorder %s20, 1
        %s1326 = scalar_select %p1325, %s20, 1
        %s1327 = smul.addr %s1326, 2
        %s1328 = smul.addr %s1327, 4
        %s1329 = scalar_lea.vmem %s6, %s1328
      $region64: #{cross_channel_attention.1} parent=55 // pred_fallthru
        _
      // Predicated region
      $region65: #{cross_channel_attention.1} parent=55 // pred_check
        %p1330 = pneg %p215
      $region66: #{cross_channel_attention.1} parent=55 // pred_check_branch
        %1332 = sbr.rel (%p1330) target = $region68
      $region67: #{cross_channel_attention.1} parent=55 // pred_region
        %p1333 = scmp.lt.s32.totalorder %s20, 1
        %s1334 = scalar_select %p1333, %s20, 1
        %s1335 = smul.addr %s1334, 2
        %s1336 = smul.addr %s1335, 4
        %s1337 = scalar_lea.vmem %s7, %s1336
      $region68: #{cross_channel_attention.1} parent=55 // pred_fallthru
        _
    $region56: #{cross_channel_attention.1} parent=5 // pred_fallthru
      _
  $region6: #{cross_channel_attention.1} parent=0 // loop_footer
    %s18 = sadd.s32 1, %s14
  $region7: #{cross_channel_attention.1} parent=0 // loop_footer_branch
    %13 = sbr.rel target = $region3
  $region8: #{cross_channel_attention.1} parent=0 // loop_exit
    _

</llo_original>
